<compile_context>
chip_gen: v5e
topology: v5e:2x2
jax: 0.10.0
libtpu: 0.0.40
codegen_flags: <defaults>
</compile_context>

<pallas_src>
import math
import functools

import jax
import jax.numpy as jnp
from jax.experimental import pallas as pl
from jax.experimental.pallas import tpu as pltpu


_LANE = 128
_MAX_TILE_ROWS = 2048   # 2048 * 128 * 4 B = 1 MiB f32 block; double-buffered
                        # x + out (+ resident pe) stays well under the 16 MiB
                        # scoped-VMEM default on v5e (32 MiB on v6e/v7x).


# ---------------------------------------------------------------------------
# Parameter setup (plain JAX): sinusoidal PE table, identical to the PyTorch
# PositionalEncoding buffer (shape [max_len, d_model], f32).
# ---------------------------------------------------------------------------
def make_positional_encoding(d_model: int, max_len: int) -> jnp.ndarray:
    position = jnp.arange(max_len, dtype=jnp.float32)[:, None]               # [L, 1]
    div_term = jnp.exp(
        jnp.arange(0, d_model, 2, dtype=jnp.float32) * (-math.log(10000.0) / d_model)
    )                                                                         # [D/2]
    pe = jnp.zeros((max_len, d_model), dtype=jnp.float32)
    pe = pe.at[:, 0::2].set(jnp.sin(position * div_term))
    pe = pe.at[:, 1::2].set(jnp.cos(position * div_term))
    return pe


# ---------------------------------------------------------------------------
# Kernels. x/out tiles are either 2-D (t_rows, 128) with batch squeezed, or
# 3-D (bt, rows, 128) when batches are fused into one tile (small sub-seq).
# ---------------------------------------------------------------------------
def _add_pe(x_ref, pe_ref):
    x = x_ref[...].astype(jnp.float32)
    pe = pe_ref[...].astype(jnp.float32)
    if x.ndim == 3:                       # batch-fused tile: broadcast PE over batch
        pe = pe[None, :, :]
    return x + pe


def _pe_add_kernel(x_ref, pe_ref, o_ref):
    # Eval mode: dropout is identity.
    o_ref[...] = _add_pe(x_ref, pe_ref).astype(o_ref.dtype)


def _pe_add_dropout_prng_kernel(seed_ref, x_ref, pe_ref, o_ref, *,
                                thr31: int, scale: float, grid_ndim: int):
    # Training mode: inverted dropout with in-kernel PRNG (no mask HBM traffic).
    step = pl.program_id(0)
    if grid_ndim == 2:
        step = step * pl.num_programs(1) + pl.program_id(1)
    pltpu.prng_seed(seed_ref[0], step)    # decorrelate streams per grid step
    y = _add_pe(x_ref, pe_ref)
    bits = pltpu.bitcast(pltpu.prng_random_bits(x_ref.shape), jnp.int32)
    r = bits & jnp.int32(0x7FFFFFFF)      # uniform over [0, 2^31)
    keep = r >= jnp.int32(thr31)          # P(drop) = thr31 / 2^31 = p
    y = jnp.where(keep, y * jnp.float32(scale), jnp.float32(0.0))
    o_ref[...] = y.astype(o_ref.dtype)


def _pe_add_dropout_mask_kernel(x_ref, pe_ref, m_ref, o_ref, *,
                                thr8: int, scale: float):
    # Fallback training mode: uint8 mask streamed from HBM (1 B/elem).
    y = _add_pe(x_ref, pe_ref)
    keep = m_ref[...].astype(jnp.int32) >= jnp.int32(thr8)
    y = jnp.where(keep, y * jnp.float32(scale), jnp.float32(0.0))
    o_ref[...] = y.astype(o_ref.dtype)


# ---------------------------------------------------------------------------
# Feature probe: does the TPU hardware PRNG lower in this environment?
# ---------------------------------------------------------------------------
@functools.lru_cache(maxsize=1)
def _kernel_prng_available() -> bool:
    def _probe(o_ref):
        pltpu.prng_seed(12345)
        o_ref[...] = pltpu.bitcast(pltpu.prng_random_bits((8, _LANE)), jnp.int32)

    try:
        out = pl.pallas_call(
            _probe, out_shape=jax.ShapeDtypeStruct((8, _LANE), jnp.int32)
        )()
        jax.block_until_ready(out)
        return True
    except Exception:
        return False


# ---------------------------------------------------------------------------
# Wrapper: dropout(x + pe[:S]) with x: [B, S, D]; matches PositionalEncoding.
# ---------------------------------------------------------------------------
def positional_encoding_forward(
    x: jnp.ndarray,
    pe_table: jnp.ndarray,
    *,
    p: float = 0.1,
    training: bool = False,
    rng_key=None,
) -> jnp.ndarray:
    B, S, D = x.shape
    dtype = x.dtype
    itemsize = jnp.dtype(dtype).itemsize

    # Lane-dense flattening; pad the per-batch flat axis to a multiple of 128
    # so every store is a full-width (unmasked) vst.
    flat = S * D
    pad = (-flat) % _LANE
    flat_p = flat + pad
    cols = _LANE
    rows = flat_p // cols

    xf = x.reshape(B, flat)
    pef = pe_table[:S, :].astype(dtype).reshape(flat)   # PE kept in x.dtype in HBM
    if pad:
        xf = jnp.pad(xf, ((0, 0), (0, pad)))
        pef = jnp.pad(pef, (0, pad))
    x2 = xf.reshape(B, rows, cols)
    pe2 = pef.reshape(rows, cols)

    # Tiling: fuse batches into one tile when the per-batch slab is small,
    # otherwise tile the flat axis with batch as the innermost grid axis so
    # the PE tile stays VMEM-resident across the inner loop.
    bt = min(B, max(1, _MAX_TILE_ROWS // rows)) if rows <= _MAX_TILE_ROWS else 1
    batched = bt > 1
    use_dropout = training and p > 0.0
    use_prng = use_dropout and _kernel_prng_available()

    n_elem = B * rows * cols
    bytes_accessed = 2 * n_elem * itemsize + rows * cols * itemsize  # x + out + pe(once)
    flops = 2 * n_elem
    if use_dropout:
        flops += 2 * n_elem
        if not use_prng:
            bytes_accessed += n_elem                                  # uint8 mask
    cost = pl.CostEstimate(flops=int(flops), transcendentals=0,
                           bytes_accessed=int(bytes_accessed))

    if use_dropout:
        if rng_key is None:
            rng_key = jax.random.PRNGKey(0)
        scale = 1.0 / (1.0 - p)

    if batched:
        grid = (pl.cdiv(B, bt),)
        dims = ("parallel",)
        grid_ndim = 1
        if use_prng:
            x_map = lambda i, seed: (i, 0, 0)
            pe_map = lambda i, seed: (0, 0)
        else:
            x_map = lambda i: (i, 0, 0)
            pe_map = lambda i: (0, 0)
        x_spec = pl.BlockSpec((bt, rows, cols), x_map)
        pe_spec = pl.BlockSpec((rows, cols), pe_map)
        out_spec = pl.BlockSpec((bt, rows, cols), x_map)
    else:
        t_rows = min(rows, _MAX_TILE_ROWS)
        grid = (pl.cdiv(rows, t_rows), B)            # batch innermost -> PE resident
        dims = ("parallel", "parallel")
        grid_ndim = 2
        if use_prng:
            x_map = lambda t, b, seed: (b, t, 0)
            pe_map = lambda t, b, seed: (t, 0)
        else:
            x_map = lambda t, b: (b, t, 0)
            pe_map = lambda t, b: (t, 0)
        x_spec = pl.BlockSpec((None, t_rows, cols), x_map)
        pe_spec = pl.BlockSpec((t_rows, cols), pe_map)
        out_spec = pl.BlockSpec((None, t_rows, cols), x_map)

    out_shape = jax.ShapeDtypeStruct((B, rows, cols), dtype)
    cparams = pltpu.CompilerParams(dimension_semantics=dims)

    if not use_dropout:
        out = pl.pallas_call(
            _pe_add_kernel,
            out_shape=out_shape, grid=grid,
            in_specs=[x_spec, pe_spec], out_specs=out_spec,
            compiler_params=cparams, cost_estimate=cost,
        )(x2, pe2)
    elif use_prng:
        thr31 = min(int(round(p * float(1 << 31))), (1 << 31) - 1)
        seed = jax.random.randint(rng_key, (1,), 0, jnp.iinfo(jnp.int32).max,
                                  dtype=jnp.int32)
        kernel = functools.partial(_pe_add_dropout_prng_kernel,
                                   thr31=thr31, scale=scale, grid_ndim=grid_ndim)
        out = pl.pallas_call(
            kernel,
            out_shape=out_shape,
            grid_spec=pltpu.PrefetchScalarGridSpec(
                num_scalar_prefetch=1, grid=grid,
                in_specs=[x_spec, pe_spec], out_specs=out_spec),
            compiler_params=cparams, cost_estimate=cost,
        )(seed, x2, pe2)
    else:
        # TODO(synk): in-kernel PRNG not lowerable in this environment; fall back
        # to a wrapper-generated uint8 mask (1 B/elem instead of 4 B/elem).
        thr8 = min(int(round(p * 256.0)), 255)
        mask = jax.random.bits(rng_key, (B, rows, cols), dtype=jnp.uint8)
        m_spec = (pl.BlockSpec((bt, rows, cols), x_map) if batched
                  else pl.BlockSpec((None, t_rows, cols), x_map))
        kernel = functools.partial(_pe_add_dropout_mask_kernel,
                                   thr8=thr8, scale=scale)
        out = pl.pallas_call(
            kernel,
            out_shape=out_shape, grid=grid,
            in_specs=[x_spec, pe_spec, m_spec], out_specs=out_spec,
            compiler_params=cparams, cost_estimate=cost,
        )(x2, pe2, mask)

    out = out.reshape(B, flat_p)
    if pad:
        out = out[:, :flat]
    return out.reshape(B, S, D)


if __name__ == "__main__":
    key = jax.random.PRNGKey(0)
    kx, kdrop, kx2, kdrop2 = jax.random.split(key, 4)
    dropout_p = 0.1

    # ---- Small shapes consistent with the module: batch=2, sub-seq=8, embed_dim=32.
    # (rows=2 -> batch-fused single-tile path)
    B, S, D = 2, 8, 32
    pe_table = make_positional_encoding(D, 64)
    x = jax.random.normal(kx, (B, S, D), dtype=jnp.float32)

    out_eval = jax.block_until_ready(
        positional_encoding_forward(x, pe_table, p=dropout_p, training=False)
    )
    ref = x + pe_table[None, :S, :]
    assert out_eval.shape == (B, S, D)
    assert jnp.allclose(out_eval, ref, atol=1e-6, rtol=1e-6)

    out_train = jax.block_until_ready(
        positional_encoding_forward(x, pe_table, p=dropout_p, training=True,
                                    rng_key=kdrop)
    )
    assert out_train.shape == (B, S, D)
    kept = out_train != 0.0
    # Surviving elements equal ref / (1 - p); dropped elements are exactly 0.
    assert jnp.allclose(
        jnp.where(kept, out_train * (1.0 - dropout_p), ref), ref,
        atol=1e-5, rtol=1e-5
    )

    # ---- Larger shape exercising the per-batch tiled path (rows=2048, grid=(1,B),
    # batch innermost, PE resident).
    B2, S2, D2 = 2, 512, 512
    pe_table2 = make_positional_encoding(D2, 600)
    x_big = jax.random.normal(kx2, (B2, S2, D2), dtype=jnp.float32)

    out_eval2 = jax.block_until_ready(
        positional_encoding_forward(x_big, pe_table2, p=dropout_p, training=False)
    )
    ref2 = x_big + pe_table2[None, :S2, :]
    assert jnp.allclose(out_eval2, ref2, atol=1e-6, rtol=1e-6)

    out_train2 = jax.block_until_ready(
        positional_encoding_forward(x_big, pe_table2, p=dropout_p, training=True,
                                    rng_key=kdrop2)
    )
    kept2 = out_train2 != 0.0
    assert jnp.allclose(
        jnp.where(kept2, out_train2 * (1.0 - dropout_p), ref2), ref2,
        atol=1e-5, rtol=1e-5
    )

    print("KERNEL_OK")
</pallas_src>

<mosaic_0001>
module attributes {stable_mosaic.version = 11 : i64} {
  func.func @_pe_add_kernel(%arg0: i32, %arg1: memref<2x2x128xf32, #tpu.memory_space<vmem>>, %arg2: memref<2x128xf32, #tpu.memory_space<vmem>>, %arg3: memref<2x2x128xf32, #tpu.memory_space<vmem>>) attributes {dimension_semantics = [#tpu.dimension_semantics<parallel>], iteration_bounds = array<i64: 1>, scalar_prefetch = 0 : i64, scratch_operands = 0 : i64, tpu.core_type = #tpu.core_type<tc>, window_params = [{transform_indices = @transform_0, window_bounds = array<i64: 2, 2, 128>}, {pipeline_mode = #tpu.pipeline_mode<synchronous>, transform_indices = @transform_1, window_bounds = array<i64: 2, 128>}, {transform_indices = @transform_2, window_bounds = array<i64: 2, 2, 128>}]} {
    %c0 = arith.constant 0 : index
    %c0_0 = arith.constant 0 : index
    %c0_1 = arith.constant 0 : index
    %0 = vector.load %arg1[%c0, %c0_0, %c0_1] : memref<2x2x128xf32, #tpu.memory_space<vmem>>, vector<2x2x128xf32>
    %c0_2 = arith.constant 0 : index
    %c0_3 = arith.constant 0 : index
    %1 = vector.load %arg2[%c0_2, %c0_3] : memref<2x128xf32, #tpu.memory_space<vmem>>, vector<2x128xf32>
    %2 = vector.shape_cast %1 : vector<2x128xf32> to vector<1x2x128xf32>
    %3 = vector.broadcast %2 : vector<1x2x128xf32> to vector<2x2x128xf32>
    %4 = arith.addf %0, %3 : vector<2x2x128xf32>
    %c0_4 = arith.constant 0 : index
    %c0_5 = arith.constant 0 : index
    %c0_6 = arith.constant 0 : index
    %5 = vector.load %arg3[%c0_4, %c0_5, %c0_6] : memref<2x2x128xf32, #tpu.memory_space<vmem>>, vector<2x2x128xf32>
    tpu.vector_store %arg3[%c0_4, %c0_5, %c0_6], %4 {strides = array<i32>} : memref<2x2x128xf32, #tpu.memory_space<vmem>>, vector<2x2x128xf32>,
    return
  }
  func.func @transform_0(%arg0: i32) -> (i32, i32, i32) {
    %c0_i32 = arith.constant 0 : i32
    %c0_i32_0 = arith.constant 0 : i32
    %c0_i32_1 = arith.constant 0 : i32
    return %arg0, %c0_i32, %c0_i32_0 : i32, i32, i32
  }
  func.func @transform_1(%arg0: i32) -> (i32, i32) {
    %c0_i32 = arith.constant 0 : i32
    %c0_i32_0 = arith.constant 0 : i32
    %c0_i32_1 = arith.constant 0 : i32
    return %c0_i32, %c0_i32_0 : i32, i32
  }
  func.func @transform_2(%arg0: i32) -> (i32, i32, i32) {
    %c0_i32 = arith.constant 0 : i32
    %c0_i32_0 = arith.constant 0 : i32
    %c0_i32_1 = arith.constant 0 : i32
    return %arg0, %c0_i32, %c0_i32_0 : i32, i32, i32
  }
}

</mosaic_0001>

<llo_original>
// kernel: tpu_custom_call.1
$region0: #{tpu_custom_call.1}
  #allocation0 [shape = 'u32[]', space=smem, size = 0x4, offset = 0x4, fixed_abs, tag = 'smem constant byte address 0x4 - core index']
  #allocation1 [shape = 'u32[72,128]{1,0:T(1,128)}', space=vmem, size = 0x9000, scoped, tag = 'internal scratch']
  %s0 = inlined_call_operand.hbm [shape: f32[2,2,128], index: 0, kind: input, shape index: {}]
  %s1 = inlined_call_operand.hbm [shape: f32[2,128], index: 1, kind: input, shape index: {}]
  %s2 = inlined_call_operand.hbm [shape: f32[2,2,128], index: 2, kind: output, shape index: {}]
  %s3 = sld [smem:[#allocation0]]
  $region26: #{tpu_custom_call.1} parent=0
    _
  %s5 = ssub.s32 1, %s3
  %s6 = scalar_select 0, %s5, %s3
  $region1: #{tpu_custom_call.1} parent=0
    #allocation2 [shape = 'u8[2048]{0}', space=vmem, size = 0x800, scoped, tag = 'input window, operand 0, single buffered']
    #allocation3 [shape = 's32[1]{0}', space=sflag, size = 0x4, scoped, tag = 'scoped memory for tpu_custom_call.1']
    #allocation4 [shape = 's32[1]{0}', space=sflag, size = 0x4, scoped, tag = 'scoped memory for tpu_custom_call.1']
    #allocation5 [shape = 'u8[1024]{0}', space=vmem, size = 0x400, scoped, tag = 'input window, operand 1, single buffered']
    #allocation6 [shape = 's32[1]{0}', space=sflag, size = 0x4, scoped, tag = 'scoped memory for tpu_custom_call.1']
    #allocation7 [shape = 'u8[2048]{0}', space=vmem, size = 0x800, scoped, tag = 'output window, operand 0, single buffered']
    %7 = vsyncpa [#allocation3], 0
    %8 = vsyncpa [#allocation6], 0
    %9 = vsyncpa [#allocation4], 0
    // Predicated region
    $region2: #{tpu_custom_call.1} parent=1 // pred_check
      _
    $region3: #{tpu_custom_call.1} parent=1 // pred_check_branch
      %11 = sbr.rel (0) target = $region5
    $region4: #{tpu_custom_call.1} parent=1 // pred_region
      %13 = vsyncadd [#allocation3], 0
      %s14 = sshll.u32 %s0, 4
      %s15 = int_to_ptr.hbm [resolvable:$true] %s14
      %s16 = sshll.u32 [#allocation2], 4
      %s17 = int_to_ptr.vmem [resolvable:$true] %s16
      %22 = dma.hbm_to_vmem [thread:$0]  %s15, 64, %s17, [#allocation3], 32, 32, 2
    $region5: #{tpu_custom_call.1} parent=1 // pred_fallthru
      _
    // Predicated region
    $region6: #{tpu_custom_call.1} parent=1 // pred_check
      _
    $region7: #{tpu_custom_call.1} parent=1 // pred_check_branch
      %24 = sbr.rel (0) target = $region9
    $region8: #{tpu_custom_call.1} parent=1 // pred_region
      %26 = vsyncadd [#allocation6], 0
      %s28 = sshll.u32 %s1, 4
      %s29 = int_to_ptr.hbm [resolvable:$true] %s28
      %s30 = sshll.u32 [#allocation5], 4
      %s31 = int_to_ptr.vmem [resolvable:$true] %s30
      %33 = dma.hbm_to_vmem [thread:$0]  %s29, 32, %s31, [#allocation6]
    $region9: #{tpu_custom_call.1} parent=1 // pred_fallthru
      _
    // Predicated region
    $region10: #{tpu_custom_call.1} parent=1 // pred_check
      _
    $region11: #{tpu_custom_call.1} parent=1 // pred_check_branch
      %35 = sbr.rel (0) target = $region13
    $region12: #{tpu_custom_call.1} parent=1 // pred_region
      %37 = dma.done [#allocation3], 64
    $region13: #{tpu_custom_call.1} parent=1 // pred_fallthru
      _
    // Predicated region
    $region14: #{tpu_custom_call.1} parent=1 // pred_check
      _
    $region15: #{tpu_custom_call.1} parent=1 // pred_check_branch
      %39 = sbr.rel (0) target = $region17
    $region16: #{tpu_custom_call.1} parent=1 // pred_region
      %41 = dma.done [#allocation6], 32
    $region17: #{tpu_custom_call.1} parent=1 // pred_fallthru
      _
    %v42 = vld [vmem:[#allocation2] sm:$0x3]
    %v43 = vld [vmem:[#allocation2 + $0x2] sm:$0x3]
    %v44 = vld [vmem:[#allocation5] sm:$0x3]
    %v45 = vadd.f32 %v42, %v44
    %v46 = vadd.f32 %v43, %v44
    %47 = vst [vmem:[#allocation7] sm:$0x3] %v45
    %48 = vst [vmem:[#allocation7 + $0x2] sm:$0x3] %v46
    // Predicated region
    $region18: #{tpu_custom_call.1} parent=1 // pred_check
      _
    $region19: #{tpu_custom_call.1} parent=1 // pred_check_branch
      %50 = sbr.rel (0) target = $region21
    $region20: #{tpu_custom_call.1} parent=1 // pred_region
      %52 = vsyncadd [#allocation4], 0
      %s53 = sshll.u32 [#allocation7], 4
      %s54 = int_to_ptr.vmem [resolvable:$true] %s53
      %s55 = sshll.u32 %s2, 4
      %s56 = int_to_ptr.hbm [resolvable:$true] %s55
      %61 = dma.vmem_to_hbm [thread:$0]  %s54, 64, %s56, [#allocation4], 32, 32, 2
    $region21: #{tpu_custom_call.1} parent=1 // pred_fallthru
      _
    // Predicated region
    $region22: #{tpu_custom_call.1} parent=1 // pred_check
      _
    $region23: #{tpu_custom_call.1} parent=1 // pred_check_branch
      %63 = sbr.rel (0) target = $region25
    $region24: #{tpu_custom_call.1} parent=1 // pred_region
      %65 = dma.done [#allocation4], 64
    $region25: #{tpu_custom_call.1} parent=1 // pred_fallthru
      _
    %66 = vsyncpa [#allocation3], 1
    %67 = vsyncpa [#allocation6], 1
    %68 = vsyncpa [#allocation4], 1

</llo_original>
